<compile_context>
chip_gen: v6e
topology: v6e:2x2x1
jax: 0.10.0
libtpu: 0.0.40
codegen_flags: <defaults>
</compile_context>

<pallas_src>
import functools

import jax
import jax.numpy as jnp
from jax.experimental import pallas as pl
from jax.experimental.pallas import tpu as pltpu

LN_EPS = 1e-5
_DEF_MAX_TM = 512

# ------------------------- hardware-aware configuration -----------------------

_HW_CFG = None         # (vmem_budget_bytes, vmem_limit_bytes)
_BUFFERED1_OK = None   # result of the one-time pl.Buffered(1) capability probe


def _hw_cfg():
    """Generation-aware VMEM sizing: ~24/48 MiB on v7x (64 MiB physical),
    ~68/100 MiB on v5e/v6e (128 MiB physical)."""
    global _HW_CFG
    if _HW_CFG is None:
        try:
            cap = int(pltpu.get_tpu_info().vmem_capacity_bytes)
        except Exception:                                     # noqa: BLE001
            cap = 64 * 1024 * 1024                            # conservative default
        limit = max(32 * 1024 * 1024,
                    min(cap - 16 * 1024 * 1024, 100 * 1024 * 1024))
        budget = max(limit // 2, limit - 32 * 1024 * 1024)
        _HW_CFG = (budget, limit)
    return _HW_CFG


def _probe_kernel(x_ref, o_ref):
    o_ref[...] = x_ref[...]


def _buffered1_supported():
    """One-time capability probe for pl.Buffered(1) (single-buffered constants).
    Avoids a blanket try/except + retrace around every real kernel."""
    global _BUFFERED1_OK
    if _BUFFERED1_OK is None:
        try:
            out = pl.pallas_call(
                _probe_kernel,
                out_shape=jax.ShapeDtypeStruct((8, 128), jnp.float32),
                grid=(1,),
                in_specs=[pl.BlockSpec((8, 128), lambda i: (0, 0),
                                       pipeline_mode=pl.Buffered(1))],
                out_specs=pl.BlockSpec((8, 128), lambda i: (0, 0)),
            )(jnp.ones((8, 128), jnp.float32))
            jax.block_until_ready(out)
            _BUFFERED1_OK = True
        except Exception:                                     # noqa: BLE001
            _BUFFERED1_OK = False
    return _BUFFERED1_OK


def _const_spec(shape, single, ngrid=2):
    """BlockSpec for a grid-invariant operand.  `single=True` (large weights
    only) drops the redundant second VMEM buffer via pl.Buffered(1)."""
    nd = len(shape)
    if ngrid == 1:
        imap = lambda i: (0,) * nd                            # noqa: E731
    else:
        imap = lambda i, j: (0,) * nd                         # noqa: E731
    if single:
        return pl.BlockSpec(shape, imap, pipeline_mode=pl.Buffered(1))
    return pl.BlockSpec(shape, imap)


def _pick_seq_tile(B, S, d_in, F, Dh, ksize, do_drt, single, budget):
    """Largest sequence tile that divides S, obeys the (8, x) sublane rule and
    keeps the (double-buffered) working set under the per-generation budget."""
    per_row = 4 * d_in * 4 + 6 * F * 4 + ksize * F * 2        # x dbuf, h/y/out, lhs
    if do_drt:
        per_row += Dh * 10 + F * 4                            # hidden f32+bf16+mask
    wbytes = 2 * ksize * F * F + (2 * d_in * F if d_in != F else 0)
    if do_drt:
        wbytes += 2 * F * Dh + 2 * Dh * F
    fixed = wbytes * (1 if single else 2) + 512 * 1024
    cap = int(min(max(8, (budget - fixed) // max(per_row, 1)), S))
    if B < 2 and S >= 16:                                     # >=2 steps for v7x 2xTC
        cap = min(cap, S // 2)
    for t in range(cap, 0, -1):
        if S % t == 0 and (t % 8 == 0 or t == S):
            return t
    return S


def _row_tile(N, per_row, budget):
    cap = int(min(max(8, budget // max(per_row, 1)), _DEF_MAX_TM, N))
    if N >= 16:
        cap = min(cap, max(8, N // 2))                        # >=2 grid steps
    for t in range(cap, 0, -1):
        if N % t == 0 and (t % 8 == 0 or t == N):
            return t
    return N


def _build_halos(x, pad, ts):
    """(ksize-1)//2-row halo slabs per sequence tile (zeros at both ends)."""
    B, S, D = x.shape
    nt = S // ts
    if nt == 1:
        z = jnp.zeros((B, 1, pad, D), x.dtype)
        return z, z
    xp = jnp.pad(x, ((0, 0), (pad, pad), (0, 0)))
    lo = xp[:, :S, :].reshape(B, nt, ts, D)[:, :, :pad, :]
    hi = xp[:, 2 * pad:, :].reshape(B, nt, ts, D)[:, :, ts - pad:, :]
    return lo, hi


# ------------------------------ kernel bodies --------------------------------

def _ln_rows(x, g, b):
    """LayerNorm over the last dim (biased var, eps=1e-5, affine), f32 math."""
    mu = jnp.mean(x, axis=-1, keepdims=True)
    var = jnp.mean(jnp.square(x - mu), axis=-1, keepdims=True)
    return (x - mu) * jax.lax.rsqrt(var + LN_EPS) * g + b


def _layer_kernel(*refs, ksize, project, do_drt, drt_scaled, final_ln):
    """Fused EncCNN layer on one (batch, seq-tile) grid step:
    [proj] -> LN -> im2col 'same' conv (single bf16 MXU matmul, f32 acc) -> ReLU
    -> partial `zeroes` counts -> residual -> [DRT] -> [out_ln on last layer]."""
    pad = (ksize - 1) // 2
    it = iter(refs)
    x_ref = next(it)
    lo_ref = next(it) if pad else None
    hi_ref = next(it) if pad else None
    pw_ref = next(it) if project else None
    g_ref, b_ref = next(it), next(it)
    cw_ref, cb_ref = next(it), next(it)
    if do_drt:
        dg_ref, db_ref = next(it), next(it)
        w0_ref, b0_ref = next(it), next(it)
        if drt_scaled:
            w1_ref, b1_ref = next(it), next(it)
    if final_ln:
        og_ref, ob_ref = next(it), next(it)
    out_ref = next(it)
    zs_cnn_ref = next(it)
    zs_drt_ref = next(it) if do_drt else None

    s = pl.program_id(1)
    nt = pl.num_programs(1)
    ts = x_ref.shape[1]
    feat = cw_ref.shape[1]

    x = x_ref[0].astype(jnp.float32)                          # (ts, Din)
    if pad:
        xlo = lo_ref[0, 0].astype(jnp.float32)                # (pad, Din)
        xhi = hi_ref[0, 0].astype(jnp.float32)
        xe = jnp.concatenate([xlo, x, xhi], axis=0)           # (ts + 2*pad, Din)
    else:
        xe = x
    if project:                                               # fused projection lay
        xe = jnp.dot(xe.astype(jnp.bfloat16), pw_ref[...],
                     preferred_element_type=jnp.float32)      # (ts + 2*pad, F)

    he = _ln_rows(xe, g_ref[...], b_ref[...])                 # LayerNorm
    if pad:
        # torchness pads with zeros *after* the LayerNorm: halo rows that fall
        # outside the original sequence must be zero post-LN.
        row = jax.lax.broadcasted_iota(jnp.int32, he.shape, 0)
        keep = ((row >= pad) | (s > 0)) & ((row < pad + ts) | (s < nt - 1))
        he = jnp.where(keep, he, 0.0)
        x_res = xe[pad:pad + ts, :] if project else x         # residual bypass
    else:
        x_res = xe if project else x

    # im2col: ksize shifted views concatenated along features -> ONE MXU matmul.
    cols = [he[k:k + ts, :].astype(jnp.bfloat16) for k in range(ksize)]
    lhs = cols[0] if ksize == 1 else jnp.concatenate(cols, axis=-1)   # (ts, K*F)
    y = jnp.dot(lhs, cw_ref[...], preferred_element_type=jnp.float32) + cb_ref[...]
    y = jnp.maximum(y, 0.0)                                   # ReLU

    # Tiny per-step partial counts of live activations; `zeroes` is finished in
    # the wrapper so both grid axes stay "parallel".
    zs_cnn_ref[...] = jnp.sum((y > 0.0).astype(jnp.float32), axis=0,
                              keepdims=True).reshape(1, 1, 1, feat)

    x_out = y + x_res                                         # LayRES residual

    if do_drt:                                                # LayBlockDRT
        d = _ln_rows(x_out, dg_ref[...], db_ref[...])
        d = jnp.dot(d.astype(jnp.bfloat16), w0_ref[...],
                    preferred_element_type=jnp.float32) + b0_ref[...]
        d = jnp.maximum(d, 0.0)
        zs_drt_ref[...] = jnp.sum((d > 0.0).astype(jnp.float32), axis=0,
                                  keepdims=True).reshape(1, 1, 1, d.shape[-1])
        if drt_scaled:
            d = jnp.dot(d.astype(jnp.bfloat16), w1_ref[...],
                        preferred_element_type=jnp.float32) + b1_ref[...]
        x_out = d + x_out                                     # DRT residual

    if final_ln:                                              # EncCNN.out_ln folded
        x_out = _ln_rows(x_out, og_ref[...], ob_ref[...])

    out_ref[...] = x_out.astype(out_ref.dtype).reshape(1, ts, feat)


def _layernorm_kernel(x_ref, g_ref, b_ref, o_ref):
    o_ref[...] = _ln_rows(x_ref[...].astype(jnp.float32),
                          g_ref[...], b_ref[...]).astype(o_ref.dtype)


def _dense_kernel(x_ref, w_ref, o_ref):
    o_ref[...] = jnp.dot(x_ref[...].astype(jnp.bfloat16), w_ref[...],
                         preferred_element_type=jnp.float32).astype(o_ref.dtype)


# --------------------------- pallas_call wrappers -----------------------------

def _fused_layer(x, bp, *, ksize, proj_w=None, do_drt=False, drt_scaled=True,
                 final_ln=False, out_ln_g=None, out_ln_b=None, alias_input=False):
    """One fused EncCNN layer. Returns (out, zs_conv, zs_drt_or_None)."""
    B, S, Din = x.shape
    F = bp['conv_w'].shape[-1]
    pad = (ksize - 1) // 2
    Dh = bp['drt']['w0'].shape[1] if do_drt else 0
    project = proj_w is not None
    single = _buffered1_supported()
    budget, vmem_limit = _hw_cfg()

    ts = _pick_seq_tile(B, S, Din, F, Dh, ksize, do_drt, single, budget)
    nt = S // ts

    args = [x]
    in_specs = [pl.BlockSpec((1, ts, Din), lambda bb, ss: (bb, ss, 0))]
    if pad:
        lo, hi = _build_halos(x, pad, ts)
        args += [lo, hi]
        halo_spec = pl.BlockSpec((1, 1, pad, Din), lambda bb, ss: (bb, ss, 0, 0))
        in_specs += [halo_spec, halo_spec]
    if project:
        args.append(proj_w.astype(jnp.bfloat16))
        in_specs.append(_const_spec((Din, F), single))
    args += [bp['ln_g'].reshape(1, F).astype(jnp.float32),
             bp['ln_b'].reshape(1, F).astype(jnp.float32),
             bp['conv_w'].reshape(ksize * F, F).astype(jnp.bfloat16),   # im2col W
             bp['conv_b'].reshape(1, F).astype(jnp.float32)]
    in_specs += [_const_spec((1, F), False), _const_spec((1, F), False),
                 _const_spec((ksize * F, F), single), _const_spec((1, F), False)]
    if do_drt:
        dp = bp['drt']
        args += [dp['ln_g'].reshape(1, F).astype(jnp.float32),
                 dp['ln_b'].reshape(1, F).astype(jnp.float32),
                 dp['w0'].astype(jnp.bfloat16),
                 dp['b0'].reshape(1, Dh).astype(jnp.float32)]
        in_specs += [_const_spec((1, F), False), _const_spec((1, F), False),
                     _const_spec((F, Dh), single), _const_spec((1, Dh), False)]
        if drt_scaled:
            args += [dp['w1'].astype(jnp.bfloat16),
                     dp['b1'].reshape(1, F).astype(jnp.float32)]
            in_specs += [_const_spec((Dh, F), single), _const_spec((1, F), False)]
    if final_ln:
        args += [out_ln_g.reshape(1, F).astype(jnp.float32),
                 out_ln_b.reshape(1, F).astype(jnp.float32)]
        in_specs += [_const_spec((1, F), False), _const_spec((1, F), False)]

    out_shapes = [jax.ShapeDtypeStruct((B, S, F), x.dtype),
                  jax.ShapeDtypeStruct((B, nt, 1, F), jnp.float32)]
    out_specs = [pl.BlockSpec((1, ts, F), lambda bb, ss: (bb, ss, 0)),
                 pl.BlockSpec((1, 1, 1, F), lambda bb, ss: (bb, ss, 0, 0))]
    if do_drt:
        out_shapes.append(jax.ShapeDtypeStruct((B, nt, 1, Dh), jnp.float32))
        out_specs.append(pl.BlockSpec((1, 1, 1, Dh), lambda bb, ss: (bb, ss, 0, 0)))

    n_ln = 1 + (1 if do_drt else 0) + (1 if final_ln else 0)
    flops = 2 * B * S * F * (ksize * F + (Din if project else 0)) + 10 * B * S * F * n_ln
    if do_drt:
        flops += 2 * B * S * F * Dh * (2 if drt_scaled else 1)
    wbytes = (2 * ksize * F * F + (2 * Din * F if project else 0)
              + ((2 * F * Dh * (2 if drt_scaled else 1)) if do_drt else 0))
    cost = pl.CostEstimate(flops=int(flops), transcendentals=int(n_ln * B * S),
                           bytes_accessed=int(B * S * (Din + F) * 4 + wbytes))

    # Alias the residual stream only when it is an intermediate produced by the
    # previous layer (never the caller's input array) and shapes/dtypes match.
    io_alias = ({0: 0} if (alias_input and not project and x.dtype == jnp.float32)
                else {})

    outs = pl.pallas_call(
        functools.partial(_layer_kernel, ksize=ksize, project=project,
                          do_drt=do_drt, drt_scaled=drt_scaled, final_ln=final_ln),
        out_shape=tuple(out_shapes),
        grid_spec=pltpu.PrefetchScalarGridSpec(
            num_scalar_prefetch=0, grid=(B, nt),
            in_specs=in_specs, out_specs=out_specs),
        compiler_params=pltpu.CompilerParams(
            dimension_semantics=("parallel", "parallel"),
            vmem_limit_bytes=vmem_limit),
        input_output_aliases=io_alias,
        cost_estimate=cost,
    )(*args)

    out = outs[0]
    zs_cnn = 1.0 - outs[1].reshape(B * nt, F).sum(axis=0) / float(B * S)
    zs_drt = None
    if do_drt:
        zs_drt = 1.0 - outs[2].reshape(B * nt, Dh).sum(axis=0) / float(B * S)
    return out, zs_cnn, zs_drt


def _layer_norm(x, g, b):
    """Standalone out_ln (used only for the degenerate n_layers==0 path)."""
    B, S, F = x.shape
    N = B * S
    budget, vmem_limit = _hw_cfg()
    tm = _row_tile(N, 8 * F * 4, budget)
    out = pl.pallas_call(
        _layernorm_kernel,
        out_shape=jax.ShapeDtypeStruct((N, F), x.dtype),
        grid_spec=pltpu.PrefetchScalarGridSpec(
            num_scalar_prefetch=0, grid=(N // tm,),
            in_specs=[pl.BlockSpec((tm, F), lambda i: (i, 0)),
                      _const_spec((1, F), False, ngrid=1),
                      _const_spec((1, F), False, ngrid=1)],
            out_specs=pl.BlockSpec((tm, F), lambda i: (i, 0))),
        compiler_params=pltpu.CompilerParams(
            dimension_semantics=("parallel",), vmem_limit_bytes=vmem_limit),
        cost_estimate=pl.CostEstimate(flops=int(10 * N * F), transcendentals=int(N),
                                      bytes_accessed=int(2 * N * F * 4)),
    )(x.reshape(N, F), g.reshape(1, F).astype(jnp.float32),
      b.reshape(1, F).astype(jnp.float32))
    return out.reshape(B, S, F)


def _dense_no_bias(x, w):
    """Standalone projection (used only for the degenerate n_layers==0 path)."""
    B, S, Din = x.shape
    Dout = w.shape[1]
    N = B * S
    budget, vmem_limit = _hw_cfg()
    single = _buffered1_supported()
    tm = _row_tile(N, 8 * (Din + Dout) * 4, budget)
    out = pl.pallas_call(
        _dense_kernel,
        out_shape=jax.ShapeDtypeStruct((N, Dout), x.dtype),
        grid_spec=pltpu.PrefetchScalarGridSpec(
            num_scalar_prefetch=0, grid=(N // tm,),
            in_specs=[pl.BlockSpec((tm, Din), lambda i: (i, 0)),
                      _const_spec((Din, Dout), single, ngrid=1)],
            out_specs=pl.BlockSpec((tm, Dout), lambda i: (i, 0))),
        compiler_params=pltpu.CompilerParams(
            dimension_semantics=("parallel",), vmem_limit_bytes=vmem_limit),
        cost_estimate=pl.CostEstimate(flops=int(2 * N * Din * Dout), transcendentals=0,
                                      bytes_accessed=int(N * (Din + Dout) * 4
                                                         + Din * Dout * 2)),
    )(x.reshape(N, Din), w.astype(jnp.bfloat16))
    return out.reshape(B, S, Dout)


# ------------------------------- EncCNN forward -------------------------------

def enc_cnn(x, params, *, n_layers, kernel_size=3, do_ldrt=False,
            ldrt_do_scaled_dns=True, shared_lays=False):
    """EncCNN forward (eval mode, history=None).

    x: (B, S, in_features) float32
    params: {'proj_w': (in_features, n_filters) or None,
             'blocks': [{'ln_g','ln_b','conv_w'(K,F,F),'conv_b',
                         'drt': {'ln_g','ln_b','w0','b0','w1','b1'}}, ...],
             'out_ln_g', 'out_ln_b'}
    Returns {'out': (B, S, n_filters), 'state': None, 'zsL': [...]}.
    """
    if kernel_size % 2 == 0:
        raise ValueError("LayBlockCNN kernel_size cannot be an even number")
    # TODO(synk): TF_Dropout / interlay / lay / res dropouts are the p=0 /
    # eval-mode identities here; training-mode stochastic dropout not implemented.
    # TODO(synk): streaming `history`/`state` path of LayBlockCNN not implemented;
    # this covers the default history=None call (symmetric zero padding, state=None).
    zsL = []
    out = x
    proj_w = params.get('proj_w')

    if n_layers == 0:                                         # degenerate config
        if proj_w is not None:
            out = _dense_no_bias(out, proj_w)
        out = _layer_norm(out, params['out_ln_g'], params['out_ln_b'])
        return {'out': out, 'state': None, 'zsL': zsL}

    for li in range(n_layers):
        bp = params['blocks'][0 if shared_lays else li]
        out, zs_cnn, zs_drt = _fused_layer(
            out, bp, ksize=kernel_size,
            proj_w=proj_w if li == 0 else None,
            do_drt=do_ldrt, drt_scaled=ldrt_do_scaled_dns,
            final_ln=(li == n_layers - 1),
            out_ln_g=params['out_ln_g'], out_ln_b=params['out_ln_b'],
            alias_input=(li > 0))
        zsL.append(zs_cnn)
        if do_ldrt:
            zsL.append(zs_drt)
    return {'out': out, 'state': None, 'zsL': zsL}


# ------------------------------ pure-JAX reference ----------------------------

def _bf16_dot(a, w):
    return jnp.dot(a.astype(jnp.bfloat16), w.astype(jnp.bfloat16),
                   preferred_element_type=jnp.float32)


def _reference(x, params, *, n_layers, kernel_size, do_ldrt, ldrt_do_scaled_dns,
               shared_lays=False):
    """Pure-JAX mirror of the PyTorch forward (eval mode), same bf16 MXU operand
    precision as the kernels."""
    out = x
    if params.get('proj_w') is not None:
        out = _bf16_dot(out, params['proj_w'])
    zsL = []
    B, S, F = out.shape
    pad = (kernel_size - 1) // 2
    for li in range(n_layers):
        bp = params['blocks'][0 if shared_lays else li]
        h = _ln_rows(out, bp['ln_g'], bp['ln_b'])
        zp = jnp.zeros((B, pad, F), jnp.float32)
        hp = jnp.concatenate([zp, h, zp], axis=1)
        y = jnp.zeros((B, S, F), jnp.float32)
        for k in range(kernel_size):
            y = y + _bf16_dot(hp[:, k:k + S, :], bp['conv_w'][k])
        y = jnp.maximum(y + bp['conv_b'], 0.0)
        zsL.append(1.0 - (y > 0.0).astype(jnp.float32).mean(axis=(0, 1)))
        out = y + out
        if do_ldrt:
            dp = bp['drt']
            d = _ln_rows(out, dp['ln_g'], dp['ln_b'])
            d = jnp.maximum(_bf16_dot(d, dp['w0']) + dp['b0'], 0.0)
            zsL.append(1.0 - (d > 0.0).astype(jnp.float32).mean(axis=(0, 1)))
            if ldrt_do_scaled_dns:
                d = _bf16_dot(d, dp['w1']) + dp['b1']
            out = d + out
    out = _ln_rows(out, params['out_ln_g'], params['out_ln_b'])
    return out, zsL


# ------------------------------------ main ------------------------------------

def _build_params(key, *, in_features, n_filters, n_layers, kernel_size, dns_scale):
    ks = iter(jax.random.split(key, 8 + 10 * n_layers))

    def nrm(shape, scale):
        return scale * jax.random.normal(next(ks), shape, jnp.float32)

    F = n_filters
    Dh = F * dns_scale
    blocks = []
    for _ in range(n_layers):
        blocks.append({
            'ln_g': 1.0 + nrm((F,), 0.1),
            'ln_b': nrm((F,), 0.1),
            # conv_w[k, cin, cout] == torch.nn.Conv1d weight[cout, cin, k]
            'conv_w': nrm((kernel_size, F, F), 1.0 / (F * kernel_size) ** 0.5),
            'conv_b': nrm((F,), 0.1),
            'drt': {
                'ln_g': 1.0 + nrm((F,), 0.1),
                'ln_b': nrm((F,), 0.1),
                'w0': nrm((F, Dh), 1.0 / F ** 0.5),
                'b0': nrm((Dh,), 0.1),
                'w1': nrm((Dh, F), 1.0 / Dh ** 0.5),
                'b1': nrm((F,), 0.1),
            },
        })
    return {
        'proj_w': (nrm((in_features, F), 1.0 / in_features ** 0.5)
                   if in_features != F else None),
        'blocks': blocks,
        'out_ln_g': 1.0 + nrm((F,), 0.1),
        'out_ln_b': nrm((F,), 0.1),
    }


if __name__ == "__main__":
    root = jax.random.PRNGKey(0)
    B, S = 2, 16
    n_layers, ksize, dns_scale = 2, 3, 4

    configs = [
        # (in_features, n_filters, do_ldrt)
        (32, 32, False),     # default EncCNN: no projection, no DRT (narrow width)
        (48, 128, True),     # projection + scaled LayBlockDRT, lane-dense width
    ]

    all_ok = True
    for ci, (in_features, n_filters, do_ldrt) in enumerate(configs):
        kp = jax.random.fold_in(root, 2 * ci)
        kx = jax.random.fold_in(root, 2 * ci + 1)
        params = _build_params(kp, in_features=in_features, n_filters=n_filters,
                               n_layers=n_layers, kernel_size=ksize,
                               dns_scale=dns_scale)
        x = jax.random.normal(kx, (B, S, in_features), jnp.float32)

        res = enc_cnn(x, params, n_layers=n_layers, kernel_size=ksize,
                      do_ldrt=do_ldrt, ldrt_do_scaled_dns=True)
        jax.block_until_ready(res['out'])
        for z in res['zsL']:
            jax.block_until_ready(z)

        ref_out, ref_zs = _reference(x, params, n_layers=n_layers,
                                     kernel_size=ksize, do_ldrt=do_ldrt,
                                     ldrt_do_scaled_dns=True)

        out_ok = bool(jnp.allclose(res['out'], ref_out, atol=2e-2, rtol=2e-2))
        zs_ok = (len(res['zsL']) == len(ref_zs)) and all(
            bool(jnp.allclose(a, b, atol=5e-2))
            for a, b in zip(res['zsL'], ref_zs))
        state_ok = res['state'] is None
        if not (out_ok and zs_ok and state_ok):
            max_err = float(jnp.max(jnp.abs(res['out'] - ref_out)))
            print(f"MISMATCH cfg={ci} in={in_features} F={n_filters} "
                  f"drt={do_ldrt} out_ok={out_ok} zs_ok={zs_ok} "
                  f"state_ok={state_ok} max_abs_err={max_err:.3e}")
            all_ok = False

    if all_ok:
        print("KERNEL_OK")
</pallas_src>

<mosaic_0001>
module attributes {stable_mosaic.version = 11 : i64} {
  func.func @_probe_kernel(%arg0: i32, %arg1: memref<8x128xf32, #tpu.memory_space<vmem>>, %arg2: memref<8x128xf32, #tpu.memory_space<vmem>>) attributes {dimension_semantics = [#tpu.dimension_semantics<arbitrary>], iteration_bounds = array<i64: 1>, scalar_prefetch = 0 : i64, scratch_operands = 0 : i64, tpu.core_type = #tpu.core_type<tc>, window_params = [{pipeline_mode = #tpu.pipeline_mode<synchronous>, transform_indices = @transform_0, window_bounds = array<i64: 8, 128>}, {pipeline_mode = #tpu.pipeline_mode<synchronous>, transform_indices = @transform_1, window_bounds = array<i64: 8, 128>}]} {
    %c0 = arith.constant 0 : index
    %c0_0 = arith.constant 0 : index
    %0 = vector.load %arg1[%c0, %c0_0] : memref<8x128xf32, #tpu.memory_space<vmem>>, vector<8x128xf32>
    %c0_1 = arith.constant 0 : index
    %c0_2 = arith.constant 0 : index
    %1 = vector.load %arg2[%c0_1, %c0_2] : memref<8x128xf32, #tpu.memory_space<vmem>>, vector<8x128xf32>
    tpu.vector_store %arg2[%c0_1, %c0_2], %0 {strides = array<i32>} : memref<8x128xf32, #tpu.memory_space<vmem>>, vector<8x128xf32>,
    return
  }
  func.func @transform_0(%arg0: i32) -> (i32, i32) {
    %c0_i32 = arith.constant 0 : i32
    %c0_i32_0 = arith.constant 0 : i32
    %c0_i32_1 = arith.constant 0 : i32
    return %c0_i32, %c0_i32_0 : i32, i32
  }
  func.func @transform_1(%arg0: i32) -> (i32, i32) {
    %c0_i32 = arith.constant 0 : i32
    %c0_i32_0 = arith.constant 0 : i32
    %c0_i32_1 = arith.constant 0 : i32
    return %c0_i32, %c0_i32_0 : i32, i32
  }
}

module attributes {stable_mosaic.version = 11 : i64} {
  func.func @_layer_kernel(%arg0: i32, %arg1: i32, %arg2: memref<1x16x32xf32, #tpu.memory_space<vmem>>, %arg3: memref<1x1x1x32xf32, #tpu.memory_space<vmem>>, %arg4: memref<1x1x1x32xf32, #tpu.memory_space<vmem>>, %arg5: memref<1x32xf32, #tpu.memory_space<vmem>>, %arg6: memref<1x32xf32, #tpu.memory_space<vmem>>, %arg7: memref<96x32xbf16, #tpu.memory_space<vmem>>, %arg8: memref<1x32xf32, #tpu.memory_space<vmem>>, %arg9: memref<1x16x32xf32, #tpu.memory_space<vmem>>, %arg10: memref<1x1x1x32xf32, #tpu.memory_space<vmem>>) attributes {dimension_semantics = [#tpu.dimension_semantics<parallel>, #tpu.dimension_semantics<parallel>], iteration_bounds = array<i64: 2, 1>, scalar_prefetch = 0 : i64, scratch_operands = 0 : i64, tpu.core_type = #tpu.core_type<tc>, window_params = [{transform_indices = @transform_0, window_bounds = array<i64: 1, 16, 32>}, {transform_indices = @transform_1, window_bounds = array<i64: 1, 1, 1, 32>}, {transform_indices = @transform_2, window_bounds = array<i64: 1, 1, 1, 32>}, {pipeline_mode = #tpu.pipeline_mode<synchronous>, transform_indices = @transform_3, window_bounds = array<i64: 1, 32>}, {pipeline_mode = #tpu.pipeline_mode<synchronous>, transform_indices = @transform_4, window_bounds = array<i64: 1, 32>}, {pipeline_mode = #tpu.pipeline_mode<synchronous>, transform_indices = @transform_5, window_bounds = array<i64: 96, 32>}, {pipeline_mode = #tpu.pipeline_mode<synchronous>, transform_indices = @transform_6, window_bounds = array<i64: 1, 32>}, {transform_indices = @transform_7, window_bounds = array<i64: 1, 16, 32>}, {transform_indices = @transform_8, window_bounds = array<i64: 1, 1, 1, 32>}]} {
    %c0 = arith.constant 0 : index
    %c0_0 = arith.constant 0 : index
    %c0_1 = arith.constant 0 : index
    %0 = vector.load %arg2[%c0, %c0_0, %c0_1] : memref<1x16x32xf32, #tpu.memory_space<vmem>>, vector<1x16x32xf32>
    %1 = vector.shape_cast %0 : vector<1x16x32xf32> to vector<16x32xf32>
    %c0_2 = arith.constant 0 : index
    %c0_3 = arith.constant 0 : index
    %c0_4 = arith.constant 0 : index
    %c0_5 = arith.constant 0 : index
    %2 = vector.load %arg3[%c0_2, %c0_3, %c0_4, %c0_5] : memref<1x1x1x32xf32, #tpu.memory_space<vmem>>, vector<1x1x1x32xf32>
    %3 = vector.shape_cast %2 : vector<1x1x1x32xf32> to vector<1x32xf32>
    %c0_6 = arith.constant 0 : index
    %c0_7 = arith.constant 0 : index
    %c0_8 = arith.constant 0 : index
    %c0_9 = arith.constant 0 : index
    %4 = vector.load %arg4[%c0_6, %c0_7, %c0_8, %c0_9] : memref<1x1x1x32xf32, #tpu.memory_space<vmem>>, vector<1x1x1x32xf32>
    %5 = vector.shape_cast %4 : vector<1x1x1x32xf32> to vector<1x32xf32>
    %6 = tpu.concatenate %3, %1, %5 in 0 : vector<1x32xf32>, vector<16x32xf32>, vector<1x32xf32> -> vector<18x32xf32>
    %c0_10 = arith.constant 0 : index
    %c0_11 = arith.constant 0 : index
    %7 = vector.load %arg5[%c0_10, %c0_11] : memref<1x32xf32, #tpu.memory_space<vmem>>, vector<1x32xf32>
    %c0_12 = arith.constant 0 : index
    %c0_13 = arith.constant 0 : index
    %8 = vector.load %arg6[%c0_12, %c0_13] : memref<1x32xf32, #tpu.memory_space<vmem>>, vector<1x32xf32>
    %cst = arith.constant dense<0.000000e+00> : vector<18xf32>
    %9 = vector.multi_reduction <add>, %6, %cst [1] : vector<18x32xf32> to vector<18xf32>
    %10 = vector.shape_cast %9 : vector<18xf32> to vector<18x1xf32>
    %cst_14 = arith.constant 3.200000e+01 : f32
    %11 = vector.broadcast %cst_14 : f32 to vector<18x1xf32>
    %12 = arith.divf %10, %11 : vector<18x1xf32>
    %13 = vector.broadcast %12 : vector<18x1xf32> to vector<18x32xf32>
    %14 = arith.subf %6, %13 : vector<18x32xf32>
    %15 = arith.mulf %14, %14 : vector<18x32xf32>
    %cst_15 = arith.constant dense<0.000000e+00> : vector<18xf32>
    %16 = vector.multi_reduction <add>, %15, %cst_15 [1] : vector<18x32xf32> to vector<18xf32>
    %17 = vector.shape_cast %16 : vector<18xf32> to vector<18x1xf32>
    %cst_16 = arith.constant 3.200000e+01 : f32
    %18 = vector.broadcast %cst_16 : f32 to vector<18x1xf32>
    %19 = arith.divf %17, %18 : vector<18x1xf32>
    %20 = vector.broadcast %12 : vector<18x1xf32> to vector<18x32xf32>
    %21 = arith.subf %6, %20 : vector<18x32xf32>
    %cst_17 = arith.constant 9.99999974E-6 : f32
    %22 = vector.broadcast %cst_17 : f32 to vector<18x1xf32>
    %23 = arith.addf %19, %22 : vector<18x1xf32>
    %24 = math.rsqrt %23 : vector<18x1xf32>
    %25 = vector.broadcast %24 : vector<18x1xf32> to vector<18x32xf32>
    %26 = arith.mulf %21, %25 : vector<18x32xf32>
    %27 = vector.broadcast %7 : vector<1x32xf32> to vector<18x32xf32>
    %28 = arith.mulf %26, %27 : vector<18x32xf32>
    %29 = vector.broadcast %8 : vector<1x32xf32> to vector<18x32xf32>
    %30 = arith.addf %28, %29 : vector<18x32xf32>
    %31 = tpu.iota {dimensions = array<i32: 0>} : vector<18x32xi32>
    %c1_i32 = arith.constant 1 : i32
    %32 = vector.broadcast %c1_i32 : i32 to vector<18x32xi32>
    %33 = arith.cmpi sge, %31, %32 : vector<18x32xi32>
    %c0_i32 = arith.constant 0 : i32
    %34 = arith.cmpi sgt, %arg1, %c0_i32 : i32
    %35 = vector.broadcast %34 : i1 to vector<18x32xi1>
    %36 = arith.ori %33, %35 : vector<18x32xi1>
    %c17_i32 = arith.constant 17 : i32
    %37 = vector.broadcast %c17_i32 : i32 to vector<18x32xi32>
    %38 = arith.cmpi slt, %31, %37 : vector<18x32xi32>
    %c0_i32_18 = arith.constant 0 : i32
    %39 = arith.cmpi slt, %arg1, %c0_i32_18 : i32
    %40 = vector.broadcast %39 : i1 to vector<18x32xi1>
    %41 = arith.ori %38, %40 : vector<18x32xi1>
    %42 = arith.andi %36, %41 : vector<18x32xi1>
    %cst_19 = arith.constant 0.000000e+00 : f32
    %43 = vector.broadcast %cst_19 : f32 to vector<18x32xf32>
    %44 = arith.select %42, %30, %43 : vector<18x32xi1>, vector<18x32xf32>
    %45 = vector.extract_strided_slice %44 {offsets = [0, 0], sizes = [16, 32], strides = [1, 1]} : vector<18x32xf32> to vector<16x32xf32>
    %46 = arith.truncf %45 : vector<16x32xf32> to vector<16x32xbf16>
    %47 = vector.extract_strided_slice %44 {offsets = [1, 0], sizes = [16, 32], strides = [1, 1]} : vector<18x32xf32> to vector<16x32xf32>
    %48 = arith.truncf %47 : vector<16x32xf32> to vector<16x32xbf16>
    %49 = vector.extract_strided_slice %44 {offsets = [2, 0], sizes = [16, 32], strides = [1, 1]} : vector<18x32xf32> to vector<16x32xf32>
    %50 = arith.truncf %49 : vector<16x32xf32> to vector<16x32xbf16>
    %51 = tpu.concatenate %46, %48, %50 in 1 : vector<16x32xbf16>, vector<16x32xbf16>, vector<16x32xbf16> -> vector<16x96xbf16>
    %c0_20 = arith.constant 0 : index
    %c0_21 = arith.constant 0 : index
    %52 = vector.load %arg7[%c0_20, %c0_21] : memref<96x32xbf16, #tpu.memory_space<vmem>>, vector<96x32xbf16>
    %cst_22 = arith.constant dense<0.000000e+00> : vector<16x32xf32>
    %53 = tpu.matmul %51, %52, %cst_22 {dimension_numbers = #tpu.dot_dimension_numbers<[1], [0], [0], [1], [0, 0, 1, 1], [], []>} : vector<16x96xbf16>, vector<96x32xbf16>, vector<16x32xf32> -> vector<16x32xf32>
    %c0_23 = arith.constant 0 : index
    %c0_24 = arith.constant 0 : index
    %54 = vector.load %arg8[%c0_23, %c0_24] : memref<1x32xf32, #tpu.memory_space<vmem>>, vector<1x32xf32>
    %55 = vector.broadcast %54 : vector<1x32xf32> to vector<16x32xf32>
    %56 = arith.addf %53, %55 : vector<16x32xf32>
    %cst_25 = arith.constant 0.000000e+00 : f32
    %57 = vector.broadcast %cst_25 : f32 to vector<16x32xf32>
    %58 = arith.maximumf %56, %57 : vector<16x32xf32>
    %cst_26 = arith.constant 0.000000e+00 : f32
    %59 = vector.broadcast %cst_26 : f32 to vector<16x32xf32>
    %60 = arith.cmpf ogt, %58, %59 : vector<16x32xf32>
    %61 = arith.extui %60 : vector<16x32xi1> to vector<16x32xi32>
    %62 = arith.sitofp %61 : vector<16x32xi32> to vector<16x32xf32>
    %cst_27 = arith.constant dense<0.000000e+00> : vector<32xf32>
    %63 = vector.multi_reduction <add>, %62, %cst_27 [0] : vector<16x32xf32> to vector<32xf32>
    %64 = vector.shape_cast %63 : vector<32xf32> to vector<1x32xf32>
    %65 = vector.shape_cast %64 : vector<1x32xf32> to vector<1x1x1x32xf32>
    %c0_28 = arith.constant 0 : index
    %c0_29 = arith.constant 0 : index
    %c0_30 = arith.constant 0 : index
    %c0_31 = arith.constant 0 : index
    %66 = vector.load %arg10[%c0_28, %c0_29, %c0_30, %c0_31] : memref<1x1x1x32xf32, #tpu.memory_space<vmem>>, vector<1x1x1x32xf32>
    tpu.vector_store %arg10[%c0_28, %c0_29, %c0_30, %c0_31], %65 {strides = array<i32>} : memref<1x1x1x32xf32, #tpu.memory_space<vmem>>, vector<1x1x1x32xf32>,
    %67 = arith.addf %58, %1 : vector<16x32xf32>
    %68 = vector.shape_cast %67 : vector<16x32xf32> to vector<1x16x32xf32>
    %c0_32 = arith.constant 0 : index
    %c0_33 = arith.constant 0 : index
    %c0_34 = arith.constant 0 : index
    %69 = vector.load %arg9[%c0_32, %c0_33, %c0_34] : memref<1x16x32xf32, #tpu.memory_space<vmem>>, vector<1x16x32xf32>
    tpu.vector_store %arg9[%c0_32, %c0_33, %c0_34], %68 {strides = array<i32>} : memref<1x16x32xf32, #tpu.memory_space<vmem>>, vector<1x16x32xf32>,
    return
  }
  func.func @transform_0(%arg0: i32, %arg1: i32) -> (i32, i32, i32) {
    %c0_i32 = arith.constant 0 : i32
    %c0_i32_0 = arith.constant 0 : i32
    return %arg0, %arg1, %c0_i32 : i32, i32, i32
  }
  func.func @transform_1(%arg0: i32, %arg1: i32) -> (i32, i32, i32, i32) {
    %c0_i32 = arith.constant 0 : i32
    %c0_i32_0 = arith.constant 0 : i32
    %c0_i32_1 = arith.constant 0 : i32
    return %arg0, %arg1, %c0_i32, %c0_i32_0 : i32, i32, i32, i32
  }
  func.func @transform_2(%arg0: i32, %arg1: i32) -> (i32, i32, i32, i32) {
    %c0_i32 = arith.constant 0 : i32
    %c0_i32_0 = arith.constant 0 : i32
    %c0_i32_1 = arith.constant 0 : i32
    return %arg0, %arg1, %c0_i32, %c0_i32_0 : i32, i32, i32, i32
  }
  func.func @transform_3(%arg0: i32, %arg1: i32) -> (i32, i32) {
    %c0_i32 = arith.constant 0 : i32
    %c0_i32_0 = arith.constant 0 : i32
    %c0_i32_1 = arith.constant 0 : i32
    return %c0_i32, %c0_i32_0 : i32, i32
  }
  func.func @transform_4(%arg0: i32, %arg1: i32) -> (i32, i32) {
    %c0_i32 = arith.constant 0 : i32
    %c0_i32_0 = arith.constant 0 : i32
    %c0_i32_1 = arith.constant 0 : i32
    return %c0_i32, %c0_i32_0 : i32, i32
  }
  func.func @transform_5(%arg0: i32, %arg1: i32) -> (i32, i32) {
    %c0_i32 = arith.constant 0 : i32
    %c0_i32_0 = arith.constant 0 : i32
    %c0_i32_1 = arith.constant 0 : i32
    return %c0_i32, %c0_i32_0 : i32, i32
  }
  func.func @transform_6(%arg0: i32, %arg1: i32) -> (i32, i32) {
    %c0_i32 = arith.constant 0 : i32
    %c0_i32_0 = arith.constant 0 : i32
    %c0_i32_1 = arith.constant 0 : i32
    return %c0_i32, %c0_i32_0 : i32, i32
  }
  func.func @transform_7(%arg0: i32, %arg1: i32) -> (i32, i32, i32) {
    %c0_i32 = arith.constant 0 : i32
    %c0_i32_0 = arith.constant 0 : i32
    return %arg0, %arg1, %c0_i32 : i32, i32, i32
  }
  func.func @transform_8(%arg0: i32, %arg1: i32) -> (i32, i32, i32, i32) {
    %c0_i32 = arith.constant 0 : i32
    %c0_i32_0 = arith.constant 0 : i32
    %c0_i32_1 = arith.constant 0 : i32
    return %arg0, %arg1, %c0_i32, %c0_i32_0 : i32, i32, i32, i32
  }
}

</mosaic_0001>

<llo_original>
// kernel: tpu_custom_call.1
$region0: #{tpu_custom_call.1}
  #allocation0 [shape = 'u32[]', space=smem, size = 0x4, offset = 0x4, fixed_abs, tag = 'smem constant byte address 0x4 - core index']
  #allocation1 [shape = 'u32[144,128]{1,0:T(1,128)}', space=vmem, size = 0x12000, scoped, tag = 'internal scratch']
  %s0 = inlined_call_operand.hbm [shape: f32[8,128], index: 0, kind: input, shape index: {}]
  %s1 = inlined_call_operand.hbm [shape: f32[8,128], index: 1, kind: output, shape index: {}]
  %s2 = sld [smem:[#allocation0]]
  $region18: #{tpu_custom_call.1} parent=0
    _
  %s4 = ssub.s32 1, %s2
  %s5 = scalar_select 0, %s4, %s2
  $region1: #{tpu_custom_call.1} parent=0
    #allocation2 [shape = 'u8[4096]{0}', space=vmem, size = 0x1000, scoped, tag = 'input window, operand 0, single buffered']
    #allocation3 [shape = 's32[1]{0}', space=sflag, size = 0x4, scoped, tag = 'scoped memory for tpu_custom_call.1']
    #allocation4 [shape = 's32[1]{0}', space=sflag, size = 0x4, scoped, tag = 'scoped memory for tpu_custom_call.1']
    #allocation5 [shape = 'u8[4096]{0}', space=vmem, size = 0x1000, scoped, tag = 'output window, operand 0, single buffered']
    %6 = vsyncpa [#allocation3], 0
    %7 = vsyncpa [#allocation4], 0
    // Predicated region
    $region2: #{tpu_custom_call.1} parent=1 // pred_check
      _
    $region3: #{tpu_custom_call.1} parent=1 // pred_check_branch
      %9 = sbr.rel (0) target = $region5
    $region4: #{tpu_custom_call.1} parent=1 // pred_region
      %s11 = ssub.s32 128, 128
      %12 = vsyncadd [#allocation3], %s11
      %s14 = sshll.u32 [#allocation2], 4
      %s15 = int_to_ptr.vmem [resolvable:$true] %s14
      %17 = dma.hbm_to_vmem [thread:$0]  %s0, 128, %s15, [#allocation3]
    $region5: #{tpu_custom_call.1} parent=1 // pred_fallthru
      _
    // Predicated region
    $region6: #{tpu_custom_call.1} parent=1 // pred_check
      _
    $region7: #{tpu_custom_call.1} parent=1 // pred_check_branch
      %19 = sbr.rel (0) target = $region9
    $region8: #{tpu_custom_call.1} parent=1 // pred_region
      %20 = dma.done [#allocation3], 128
    $region9: #{tpu_custom_call.1} parent=1 // pred_fallthru
      _
    %v21 = vld [vmem:[#allocation2] sm:$0xff]
    %22 = vst [vmem:[#allocation5] sm:$0xff] %v21
    // Predicated region
    $region10: #{tpu_custom_call.1} parent=1 // pred_check
      _
    $region11: #{tpu_custom_call.1} parent=1 // pred_check_branch
      %24 = sbr.rel (0) target = $region13
    $region12: #{tpu_custom_call.1} parent=1 // pred_region
      %s26 = ssub.s32 128, 128
      %27 = vsyncadd [#allocation4], %s26
      %s29 = sshll.u32 [#allocation5], 4
      %s30 = int_to_ptr.vmem [resolvable:$true] %s29
      %32 = dma.vmem_to_hbm [thread:$0]  %s30, 128, %s1, [#allocation4]
    $region13: #{tpu_custom_call.1} parent=1 // pred_fallthru
      _
    // Predicated region
    $region14: #{tpu_custom_call.1} parent=1 // pred_check
      _
    $region15: #{tpu_custom_call.1} parent=1 // pred_check_branch
      %34 = sbr.rel (0) target = $region17
    $region16: #{tpu_custom_call.1} parent=1 // pred_region
      %35 = dma.done [#allocation4], 128
    $region17: #{tpu_custom_call.1} parent=1 // pred_fallthru
      _
    %36 = vsyncpa [#allocation3], 1
    %37 = vsyncpa [#allocation4], 1

// kernel: tpu_custom_call.1
$region0: #{tpu_custom_call.1}
  #allocation0 [shape = 'u32[]', space=smem, size = 0x4, offset = 0x4, fixed_abs, tag = 'smem constant byte address 0x4 - core index']
  #allocation1 [shape = 'u32[144,128]{1,0:T(1,128)}', space=vmem, size = 0x12000, scoped, tag = 'internal scratch']
  %s0 = inlined_call_operand.vmem [shape: f32[2,16,32], index: 0, kind: input, shape index: {}]
  %s1 = inlined_call_operand.vmem [shape: f32[2,1,1,32], index: 1, kind: input, shape index: {}]
  %s2 = inlined_call_operand.vmem [shape: f32[2,1,1,32], index: 2, kind: input, shape index: {}]
  %s3 = inlined_call_operand.vmem [shape: f32[1,32], index: 3, kind: input, shape index: {}]
  %s4 = inlined_call_operand.vmem [shape: f32[1,32], index: 4, kind: input, shape index: {}]
  %s5 = inlined_call_operand.vmem [shape: bf16[96,32], index: 5, kind: input, shape index: {}]
  %s6 = inlined_call_operand.vmem [shape: f32[1,32], index: 6, kind: input, shape index: {}]
  %s7 = inlined_call_operand.hbm [shape: f32[2,16,32], index: 7, kind: output, shape index: {0}]
  %s8 = inlined_call_operand.hbm [shape: f32[2,1,1,32], index: 8, kind: output, shape index: {1}]
  %9 = xla_tuple %s7, %s8
  %s10 = sld [smem:[#allocation0]]
  $region69: #{tpu_custom_call.1} parent=0
    _
  %s12 = ssub.s32 1, %s10
  %s13 = scalar_select 0, %s12, %s10
  $region1: #{tpu_custom_call.1} parent=0
    #allocation2 [shape = 'u8[16384]{0}', space=vmem, size = 0x4000, scoped, tag = 'output window, operand 0']
    #allocation3 [shape = 's32[2]{0}', space=sflag, size = 0x8, scoped, tag = 'scoped memory for tpu_custom_call.1']
    #allocation4 [shape = 'u8[1024]{0}', space=vmem, size = 0x400, scoped, tag = 'output window, operand 1']
    #allocation5 [shape = 's32[2]{0}', space=sflag, size = 0x8, scoped, tag = 'scoped memory for tpu_custom_call.1']
    %14 = vsyncpa [#allocation3], 0
    %s15 = scalar_lea.sflag [#allocation3], 1
    %16 = vsyncpa %s15, 0
    %17 = vsyncpa [#allocation5], 0
    %s18 = scalar_lea.sflag [#allocation5], 1
    %19 = vsyncpa %s18, 0
    loop: start=0, step=1, limit=4
    $region2: #{tpu_custom_call.1} parent=1 // loop_pre_header
      _
    $region3: #{tpu_custom_call.1} parent=1 // loop_header
      %s21 = sphi 0, %s25
      %p22 = scmp.ge.s32.totalorder %s21, 4
      %s28 = sphi 0, %s40
      %s29 = sphi 0, %s36
      %s30 = sphi 0, %s28
      %s31 = sphi 0, %s29
      %s32 = sphi 0, %s30
      %s33 = sphi 0, %s31
      %s45 = sphi 0, %s47
      %s48 = sphi 0, %s45
      %s49 = sphi 0, %s48
      %s65 = sphi 0, %s49
      %s73 = sphi 0, %s75
      %s76 = sphi 0, %s73
      %s77 = sphi 0, %s76
      %s93 = sphi 0, %s77
      %s101 = sphi 0, %s103
      %s104 = sphi 0, %s101
      %s105 = sphi 0, %s104
      %s121 = sphi 0, %s105
      %s125 = sphi 0, %s125
      %s127 = sphi 0, %s125
      %s128 = sphi 0, %s127
      %s142 = sphi 0, %s128
      %s146 = sphi 0, %s146
      %s148 = sphi 0, %s146
      %s149 = sphi 0, %s148
      %s163 = sphi 0, %s149
      %s167 = sphi 0, %s167
      %s169 = sphi 0, %s167
      %s170 = sphi 0, %s169
      %s184 = sphi 0, %s170
      %s188 = sphi 0, %s188
      %s190 = sphi 0, %s188
      %s191 = sphi 0, %s190
      %s205 = sphi 0, %s191
      %s213 = sphi 0, %s215
      %s216 = sphi 0, %s213
      %s217 = sphi 0, %s216
      %s233 = sphi 0, %s217
      %s241 = sphi 0, %s243
      %s244 = sphi 0, %s241
      %s245 = sphi 0, %s244
      %s261 = sphi 0, %s245
    $region4: #{tpu_custom_call.1} parent=1 // loop_header_branch
      %24 = sbr.rel (%p22) target = $region8
    $region5: #{tpu_custom_call.1} parent=1 // loop_body
      %s26 = ssub.s32 %s21, 1
      %s27 = ssub.s32 %s21, 2
      %s34 = sadd.s32 1, %s29
      %p35 = scmp.ge.s32.totalorder %s34, 1
      %s36 = scalar_select %p35, 0, %s34
      %s37 = sadd.s32 1, %s28
      %s38 = scalar_select %p35, %s37, %s28
      %p39 = scmp.ge.s32.totalorder %s38, 2
      %s40 = scalar_select %p39, 0, %s38
      %s41 = ssub.s32 %s28, %s40
      %s42 = ssub.s32 %s29, %s36
      %s43 = sor.u32 %s41, %s42
      %p44 = scmp.eq.s32.totalorder %s43, 0
      %s46 = sadd.s32 %s45, 1
      %s47 = scalar_select %p44, %s45, %s46
      %p50 = pneg %p44
      %p51 = scmp.eq.s32.totalorder %s21, 1
      %p52 = por %p50, %p51
      %p53 = scmp.ne.s32.totalorder %s45, %s48
      %p54 = scmp.eq.s32.totalorder %s21, 0
      %p55 = por %p53, %p54
      %p56 = scmp.ne.s32.totalorder %s45, %s48
      %p57 = scmp.eq.s32.totalorder %s26, 1
      %p58 = por %p56, %p57
      %p59 = scmp.ne.s32.totalorder %s48, %s49
      %p60 = scmp.eq.s32.totalorder %s26, 0
      %p61 = por %p59, %p60
      %p62 = scmp.ne.s32.totalorder %s48, %s49
      %p63 = scmp.eq.s32.totalorder %s27, 1
      %p64 = por %p62, %p63
      %p66 = scmp.ne.s32.totalorder %s49, %s65
      %p67 = scmp.eq.s32.totalorder %s27, 0
      %p68 = por %p66, %p67
      %s69 = ssub.s32 %s28, %s40
      %s70 = ssub.s32 %s29, %s36
      %s71 = sor.u32 %s69, %s70
      %p72 = scmp.eq.s32.totalorder %s71, 0
      %s74 = sadd.s32 %s73, 1
      %s75 = scalar_select %p72, %s73, %s74
      %p78 = pneg %p72
      %p79 = scmp.eq.s32.totalorder %s21, 1
      %p80 = por %p78, %p79
      %p81 = scmp.ne.s32.totalorder %s73, %s76
      %p82 = scmp.eq.s32.totalorder %s21, 0
      %p83 = por %p81, %p82
      %p84 = scmp.ne.s32.totalorder %s73, %s76
      %p85 = scmp.eq.s32.totalorder %s26, 1
      %p86 = por %p84, %p85
      %p87 = scmp.ne.s32.totalorder %s76, %s77
      %p88 = scmp.eq.s32.totalorder %s26, 0
      %p89 = por %p87, %p88
      %p90 = scmp.ne.s32.totalorder %s76, %s77
      %p91 = scmp.eq.s32.totalorder %s27, 1
      %p92 = por %p90, %p91
      %p94 = scmp.ne.s32.totalorder %s77, %s93
      %p95 = scmp.eq.s32.totalorder %s27, 0
      %p96 = por %p94, %p95
      %s97 = ssub.s32 %s28, %s40
      %s98 = ssub.s32 %s29, %s36
      %s99 = sor.u32 %s97, %s98
      %p100 = scmp.eq.s32.totalorder %s99, 0
      %s102 = sadd.s32 %s101, 1
      %s103 = scalar_select %p100, %s101, %s102
      %p106 = pneg %p100
      %p107 = scmp.eq.s32.totalorder %s21, 1
      %p108 = por %p106, %p107
      %p109 = scmp.ne.s32.totalorder %s101, %s104
      %p110 = scmp.eq.s32.totalorder %s21, 0
      %p111 = por %p109, %p110
      %p112 = scmp.ne.s32.totalorder %s101, %s104
      %p113 = scmp.eq.s32.totalorder %s26, 1
      %p114 = por %p112, %p113
      %p115 = scmp.ne.s32.totalorder %s104, %s105
      %p116 = scmp.eq.s32.totalorder %s26, 0
      %p117 = por %p115, %p116
      %p118 = scmp.ne.s32.totalorder %s104, %s105
      %p119 = scmp.eq.s32.totalorder %s27, 1
      %p120 = por %p118, %p119
      %p122 = scmp.ne.s32.totalorder %s105, %s121
      %p123 = scmp.eq.s32.totalorder %s27, 0
      %p124 = por %p122, %p123
      %s126 = sadd.s32 %s125, 1
      %p129 = scmp.eq.s32.totalorder %s21, 1
      %p130 = scmp.ne.s32.totalorder %s125, %s127
      %p131 = scmp.eq.s32.totalorder %s21, 0
      %p132 = por %p130, %p131
      %p133 = scmp.ne.s32.totalorder %s125, %s127
      %p134 = scmp.eq.s32.totalorder %s26, 1
      %p135 = por %p133, %p134
      %p136 = scmp.ne.s32.totalorder %s127, %s128
      %p137 = scmp.eq.s32.totalorder %s26, 0
      %p138 = por %p136, %p137
      %p139 = scmp.ne.s32.totalorder %s127, %s128
      %p140 = scmp.eq.s32.totalorder %s27, 1
      %p141 = por %p139, %p140
      %p143 = scmp.ne.s32.totalorder %s128, %s142
      %p144 = scmp.eq.s32.totalorder %s27, 0
      %p145 = por %p143, %p144
      %s147 = sadd.s32 %s146, 1
      %p150 = scmp.eq.s32.totalorder %s21, 1
      %p151 = scmp.ne.s32.totalorder %s146, %s148
      %p152 = scmp.eq.s32.totalorder %s21, 0
      %p153 = por %p151, %p152
      %p154 = scmp.ne.s32.totalorder %s146, %s148
      %p155 = scmp.eq.s32.totalorder %s26, 1
      %p156 = por %p154, %p155
      %p157 = scmp.ne.s32.totalorder %s148, %s149
      %p158 = scmp.eq.s32.totalorder %s26, 0
      %p159 = por %p157, %p158
      %p160 = scmp.ne.s32.totalorder %s148, %s149
      %p161 = scmp.eq.s32.totalorder %s27, 1
      %p162 = por %p160, %p161
      %p164 = scmp.ne.s32.totalorder %s149, %s163
      %p165 = scmp.eq.s32.totalorder %s27, 0
      %p166 = por %p164, %p165
      %s168 = sadd.s32 %s167, 1
      %p171 = scmp.eq.s32.totalorder %s21, 1
      %p172 = scmp.ne.s32.totalorder %s167, %s169
      %p173 = scmp.eq.s32.totalorder %s21, 0
      %p174 = por %p172, %p173
      %p175 = scmp.ne.s32.totalorder %s167, %s169
      %p176 = scmp.eq.s32.totalorder %s26, 1
      %p177 = por %p175, %p176
      %p178 = scmp.ne.s32.totalorder %s169, %s170
      %p179 = scmp.eq.s32.totalorder %s26, 0
      %p180 = por %p178, %p179
      %p181 = scmp.ne.s32.totalorder %s169, %s170
      %p182 = scmp.eq.s32.totalorder %s27, 1
      %p183 = por %p181, %p182
      %p185 = scmp.ne.s32.totalorder %s170, %s184
      %p186 = scmp.eq.s32.totalorder %s27, 0
      %p187 = por %p185, %p186
      %s189 = sadd.s32 %s188, 1
      %p192 = scmp.eq.s32.totalorder %s21, 1
      %p193 = scmp.ne.s32.totalorder %s188, %s190
      %p194 = scmp.eq.s32.totalorder %s21, 0
      %p195 = por %p193, %p194
      %p196 = scmp.ne.s32.totalorder %s188, %s190
      %p197 = scmp.eq.s32.totalorder %s26, 1
      %p198 = por %p196, %p197
      %p199 = scmp.ne.s32.totalorder %s190, %s191
      %p200 = scmp.eq.s32.totalorder %s26, 0
      %p201 = por %p199, %p200
      %p202 = scmp.ne.s32.totalorder %s190, %s191
      %p203 = scmp.eq.s32.totalorder %s27, 1
      %p204 = por %p202, %p203
      %p206 = scmp.ne.s32.totalorder %s191, %s205
      %p207 = scmp.eq.s32.totalorder %s27, 0
      %p208 = por %p206, %p207
      %s209 = ssub.s32 %s28, %s40
      %s210 = ssub.s32 %s29, %s36
      %s211 = sor.u32 %s209, %s210
      %p212 = scmp.eq.s32.totalorder %s211, 0
      %s214 = sadd.s32 %s213, 1
      %s215 = scalar_select %p212, %s213, %s214
      %p218 = pneg %p212
      %p219 = scmp.eq.s32.totalorder %s21, 1
      %p220 = por %p218, %p219
      %p221 = scmp.ne.s32.totalorder %s213, %s216
      %p222 = scmp.eq.s32.totalorder %s21, 0
      %p223 = por %p221, %p222
      %p224 = scmp.ne.s32.totalorder %s213, %s216
      %p225 = scmp.eq.s32.totalorder %s26, 1
      %p226 = por %p224, %p225
      %p227 = scmp.ne.s32.totalorder %s216, %s217
      %p228 = scmp.eq.s32.totalorder %s26, 0
      %p229 = por %p227, %p228
      %p230 = scmp.ne.s32.totalorder %s216, %s217
      %p231 = scmp.eq.s32.totalorder %s27, 1
      %p232 = por %p230, %p231
      %p234 = scmp.ne.s32.totalorder %s217, %s233
      %p235 = scmp.eq.s32.totalorder %s27, 0
      %p236 = por %p234, %p235
      %s237 = ssub.s32 %s28, %s40
      %s238 = ssub.s32 %s29, %s36
      %s239 = sor.u32 %s237, %s238
      %p240 = scmp.eq.s32.totalorder %s239, 0
      %s242 = sadd.s32 %s241, 1
      %s243 = scalar_select %p240, %s241, %s242
      %p246 = pneg %p240
      %p247 = scmp.eq.s32.totalorder %s21, 1
      %p248 = por %p246, %p247
      %p249 = scmp.ne.s32.totalorder %s241, %s244
      %p250 = scmp.eq.s32.totalorder %s21, 0
      %p251 = por %p249, %p250
      %p252 = scmp.ne.s32.totalorder %s241, %s244
      %p253 = scmp.eq.s32.totalorder %s26, 1
      %p254 = por %p252, %p253
      %p255 = scmp.ne.s32.totalorder %s244, %s245
      %p256 = scmp.eq.s32.totalorder %s26, 0
      %p257 = por %p255, %p256
      %p258 = scmp.ne.s32.totalorder %s244, %s245
      %p259 = scmp.eq.s32.totalorder %s27, 1
      %p260 = por %p258, %p259
      %p262 = scmp.ne.s32.totalorder %s245, %s261
      %p263 = scmp.eq.s32.totalorder %s27, 0
      %p264 = por %p262, %p263
      %p265 = scmp.le.s32.totalorder 1, %s21
      %p266 = scmp.lt.s32.totalorder %s21, 3
      %p267 = pnand %p265, %p266
      %p268 = pneg %p267
      // Predicated region
      $region9: #{tpu_custom_call.1} parent=5 // pred_check
        _
      $region10: #{tpu_custom_call.1} parent=5 // pred_check_branch
        %270 = sbr.rel (%p267) target = $region12
      $region11: #{tpu_custom_call.1} parent=5 // pred_region
        %s271 = ssub.s32 %s21, 1
        // Predicated region
        $region13: #{tpu_custom_call.1} parent=11 // pred_check
          %p272 = pneg %p138
        $region14: #{tpu_custom_call.1} parent=11 // pred_check_branch
          %274 = sbr.rel (%p272) target = $region16
        $region15: #{tpu_custom_call.1} parent=11 // pred_region
          _
        $region16: #{tpu_custom_call.1} parent=11 // pred_fallthru
          _
        // Predicated region
        $region17: #{tpu_custom_call.1} parent=11 // pred_check
          %p275 = pneg %p159
        $region18: #{tpu_custom_call.1} parent=11 // pred_check_branch
          %277 = sbr.rel (%p275) target = $region20
        $region19: #{tpu_custom_call.1} parent=11 // pred_region
          _
        $region20: #{tpu_custom_call.1} parent=11 // pred_fallthru
          _
        // Predicated region
        $region21: #{tpu_custom_call.1} parent=11 // pred_check
          %p278 = pneg %p180
        $region22: #{tpu_custom_call.1} parent=11 // pred_check_branch
          %280 = sbr.rel (%p278) target = $region24
        $region23: #{tpu_custom_call.1} parent=11 // pred_region
          _
        $region24: #{tpu_custom_call.1} parent=11 // pred_fallthru
          _
        // Predicated region
        $region25: #{tpu_custom_call.1} parent=11 // pred_check
          %p281 = pneg %p201
        $region26: #{tpu_custom_call.1} parent=11 // pred_check_branch
          %283 = sbr.rel (%p281) target = $region28
        $region27: #{tpu_custom_call.1} parent=11 // pred_region
          _
        $region28: #{tpu_custom_call.1} parent=11 // pred_fallthru
          _
      $region12: #{tpu_custom_call.1} parent=5 // pred_fallthru
        _
      %p284 = scmp.lt.s32.totalorder %s21, 2
      // Predicated region
      $region29: #{tpu_custom_call.1} parent=5 // pred_check
        %p285 = pneg %p284
      $region30: #{tpu_custom_call.1} parent=5 // pred_check_branch
        %287 = sbr.rel (%p285) target = $region32
      $region31: #{tpu_custom_call.1} parent=5 // pred_region
        // Predicated region
        $region33: #{tpu_custom_call.1} parent=31 // pred_check
          %p288 = pneg %p55
        $region34: #{tpu_custom_call.1} parent=31 // pred_check_branch
          %290 = sbr.rel (%p288) target = $region36
        $region35: #{tpu_custom_call.1} parent=31 // pred_region
          %s291 = smul.u32 2, %s29
          %p292 = scmp.lt.s32.totalorder %s28, 1
          %s293 = scalar_select %p292, %s28, 1
          %p294 = scmp.lt.s32.totalorder %s291, 1
          %s295 = scalar_select %p294, %s291, 1
          %s296 = smul.addr %s293, 2
          %s297 = sadd.s32 %s295, %s296
          %s298 = smul.addr %s297, 8
          %s299 = scalar_lea.vmem %s0, %s298
          %s300 = smul.u32 2, %s29
        $region36: #{tpu_custom_call.1} parent=31 // pred_fallthru
          _
        // Predicated region
        $region37: #{tpu_custom_call.1} parent=31 // pred_check
          %p301 = pneg %p83
        $region38: #{tpu_custom_call.1} parent=31 // pred_check_branch
          %303 = sbr.rel (%p301) target = $region40
        $region39: #{tpu_custom_call.1} parent=31 // pred_region
          %p304 = scmp.lt.s32.totalorder %s28, 1
          %s305 = scalar_select %p304, %s28, 1
          %p306 = scmp.lt.s32.totalorder %s29, 0
          %s307 = scalar_select %p306, %s29, 0
          %s308 = sadd.s32 %s307, %s305
          %s309 = scalar_lea.vmem %s1, %s308
        $region40: #{tpu_custom_call.1} parent=31 // pred_fallthru
          _
        // Predicated region
        $region41: #{tpu_custom_call.1} parent=31 // pred_check
          %p310 = pneg %p111
        $region42: #{tpu_custom_call.1} parent=31 // pred_check_branch
          %312 = sbr.rel (%p310) target = $region44
        $region43: #{tpu_custom_call.1} parent=31 // pred_region
          %p313 = scmp.lt.s32.totalorder %s28, 1
          %s314 = scalar_select %p313, %s28, 1
          %p315 = scmp.lt.s32.totalorder %s29, 0
          %s316 = scalar_select %p315, %s29, 0
          %s317 = sadd.s32 %s316, %s314
          %s318 = scalar_lea.vmem %s2, %s317
        $region44: #{tpu_custom_call.1} parent=31 // pred_fallthru
          _
      $region32: #{tpu_custom_call.1} parent=5 // pred_fallthru
        _
      %p319 = scmp.le.s32.totalorder 1, %s21
      %p320 = scmp.lt.s32.totalorder %s21, 3
      %p321 = pnand %p319, %p320
      %p322 = pneg %p321
      // Predicated region
      $region45: #{tpu_custom_call.1} parent=5 // pred_check
        _
      $region46: #{tpu_custom_call.1} parent=5 // pred_check_branch
        %324 = sbr.rel (%p321) target = $region48
      $region47: #{tpu_custom_call.1} parent=5 // pred_region
        %s325 = ssub.s32 %s21, 1
        %s326 = smul.u32 2, %s31
        %p327 = scmp.lt.s32.totalorder %s30, 1
        %s328 = scalar_select %p327, %s30, 1
        %p329 = scmp.lt.s32.totalorder %s326, 1
        %s330 = scalar_select %p329, %s326, 1
        %s331 = smul.addr %s328, 2
        %s332 = sadd.s32 %s330, %s331
        %s333 = smul.addr %s332, 8
        %s334 = scalar_lea.vmem %s0, %s333
        %p335 = pneg %p61
        %p336 = pneg %p58
        %p337 = scmp.lt.s32.totalorder %s30, 1
        %s338 = scalar_select %p337, %s30, 1
        %p339 = scmp.lt.s32.totalorder %s31, 0
        %s340 = scalar_select %p339, %s31, 0
        %s341 = sadd.s32 %s340, %s338
        %s342 = scalar_lea.vmem %s1, %s341
        %p343 = pneg %p89
        %p344 = pneg %p86
        %p345 = scmp.lt.s32.totalorder %s30, 1
        %s346 = scalar_select %p345, %s30, 1
        %p347 = scmp.lt.s32.totalorder %s31, 0
        %s348 = scalar_select %p347, %s31, 0
        %s349 = sadd.s32 %s348, %s346
        %s350 = scalar_lea.vmem %s2, %s349
        %p351 = pneg %p117
        %p352 = pneg %p114
        %p353 = pneg %p138
        %p354 = pneg %p135
        %p355 = pneg %p159
        %p356 = pneg %p156
        %p357 = pneg %p180
        %p358 = pneg %p177
        %p359 = pneg %p201
        %p360 = pneg %p198
        %p361 = pneg %p229
        %p362 = pneg %p226
        %s363 = sand.u32 %s216, 1
        %s364 = scalar_lea.sflag [#allocation3], %s363
        %s365 = sand.u32 %s216, 1
        %s366 = smul.addr %s365, 16
        %s367 = scalar_lea.vmem [#allocation2], %s366
        %p368 = pneg %p257
        %p369 = pneg %p254
        %s370 = sand.u32 %s244, 1
        %s371 = scalar_lea.sflag [#allocation5], %s370
        %s372 = sand.u32 %s244, 1
        %s373 = scalar_lea.vmem [#allocation4], %s372
        %s374 = smul.u32 2, %s31
        %p375 = scmp.lt.s32.totalorder %s30, 1
        %s376 = scalar_select %p375, %s30, 1
        %p377 = scmp.lt.s32.totalorder %s374, 1
        %s378 = scalar_select %p377, %s374, 1
        %s379 = smul.addr %s376, 2
        %s380 = sadd.s32 %s378, %s379
        %s381 = smul.addr %s380, 8
        %s382 = scalar_lea.vmem %s0, %s381
        %s383 = smul.u32 2, %s31
        %p384 = scmp.lt.s32.totalorder %s30, 1
        %s385 = scalar_select %p384, %s30, 1
        %p386 = scmp.lt.s32.totalorder %s31, 0
        %s387 = scalar_select %p386, %s31, 0
        %s388 = sadd.s32 %s387, %s385
        %s389 = scalar_lea.vmem %s1, %s388
        %p390 = scmp.lt.s32.totalorder %s30, 1
        %s391 = scalar_select %p390, %s30, 1
        %p392 = scmp.lt.s32.totalorder %s31, 0
        %s393 = scalar_select %p392, %s31, 0
        %s394 = sadd.s32 %s393, %s391
        %s395 = scalar_lea.vmem %s2, %s394
        %s396 = smul.u32 2, %s31
        %v398 = vld [vmem:[%s382] sm:$0xff]
        %v399 = vld [vmem:[%s382 + $0x8] sm:$0xff]
        %v400 = vld [vmem:[%s389] sm:$0x1]
        %v401 = vld [vmem:[%s395] sm:$0x1]
        %vm404 = vcmask 1040384
        %v405 = vrot.slane %v398, 7
        %v406 = vrot.slane %v399, 7
        %v407 = vsel %vm404, %v405, %v406
        %v412 = vlaneseq
        %v413 = vshrl.u32 %v412, 7
        %v414 = vsub.s32 0, %v413
        %v415 = vrot.slane %v401, %v414
        %v417 = vsel %vm404, %v400, %v405
        %v418 = vsel %vm404, %v406, %v415
        %v419 = vld [vmem:[%s3] sm:$0x1]
        %v420 = vld [vmem:[%s4] sm:$0x1]
        %vm421 = vcmask 261120
        %v422 = vsel %vm421, %v417, 0.0
        %423 = vadd.xlane.f32.xlu0 %v422
        %v424 = vpop.xlane.xlu0 %423
        %v425 = vsel %vm421, %v407, 0.0
        %426 = vadd.xlane.f32.xlu0 %v425
        %v427 = vpop.xlane.xlu0 %426
        %vm428 = vcmask 254976
        %v429 = vsel %vm428, %v418, 0.0
        %430 = vadd.xlane.f32.xlu0 %v429
        %v431 = vpop.xlane.xlu0 %430
        %v432 = vrcp.pop 32.0
        %v433 = vmul.f32 %v424, %v432
        %v434 = vmul.f32 %v427, %v432
        %v435 = vmul.f32 %v431, %v432
        %v436 = vsub.f32 %v417, %v433
        %v437 = vsub.f32 %v407, %v434
        %v438 = vsub.f32 %v418, %v435
        %v439 = vmul.f32 %v436, %v436
        %v440 = vmul.f32 %v437, %v437
        %v441 = vmul.f32 %v438, %v438
        %v442 = vsel %vm421, %v439, 0.0
        %443 = vadd.xlane.f32.xlu0 %v442
        %v444 = vpop.xlane.xlu0 %443
        %v445 = vsel %vm421, %v440, 0.0
        %446 = vadd.xlane.f32.xlu0 %v445
        %v447 = vpop.xlane.xlu0 %446
        %v448 = vsel %vm428, %v441, 0.0
        %449 = vadd.xlane.f32.xlu0 %v448
        %v450 = vpop.xlane.xlu0 %449
        %v451 = vmul.f32 %v444, %v432
        %v452 = vmul.f32 %v447, %v432
        %v453 = vmul.f32 %v450, %v432
        %v454 = vadd.f32 %v451, 1e-05
        %v455 = vadd.f32 %v452, 1e-05
        %v456 = vadd.f32 %v453, 1e-05
        %v457 = vrsqrt.pop %v454
        %v458 = vrsqrt.pop %v455
        %v459 = vrsqrt.pop %v456
        %v460 = vmul.f32 %v436, %v457
        %v461 = vmul.f32 %v437, %v458
        %v462 = vmul.f32 %v438, %v459
        %v464 = vlaneseq
        %v465 = vshrl.u32 %v464, 7
        %v466 = vsub.s32 0, %v465
        %v467 = vrot.slane %v419, %v466
        %v469 = vmul.f32 %v460, %v467
        %v470 = vmul.f32 %v461, %v467
        %v471 = vmul.f32 %v462, %v467
        %v473 = vlaneseq
        %v474 = vshrl.u32 %v473, 7
        %v475 = vsub.s32 0, %v474
        %v476 = vrot.slane %v420, %v475
        %v478 = vadd.f32 %v469, %v476
        %v479 = vadd.f32 %v470, %v476
        %v480 = vadd.f32 %v471, %v476
        %v481 = vlaneseq
        %v482 = vshrl.u32 %v481, 7
        %v483 = vadd.s32 %v482, 8
        %v484 = vadd.s32 %v482, 16
        %vm485 = vcmp.ge.s32.totalorder %v482, 1
        %vm486 = vcmp.ge.s32.totalorder %v483, 1
        %vm487 = vcmp.ge.s32.totalorder %v484, 1
        %p488 = scmp.gt.s32.totalorder %s31, 0
        %s489 = scalar_select %p488, 1, 0
        %v490 = vstv %s489
        %vm491 = vcmp.eq.s32.totalorder %v490, 1
        %vm492 = vmor %vm485, %vm491
        %vm493 = vmor %vm486, %vm491
        %vm494 = vmor %vm487, %vm491
        %vm495 = vcmp.lt.s32.totalorder %v482, 17
        %vm496 = vcmp.lt.s32.totalorder %v483, 17
        %vm497 = vcmp.lt.s32.totalorder %v484, 17
        %p498 = scmp.lt.s32.totalorder %s31, 0
        %s499 = scalar_select %p498, 1, 0
        %v500 = vstv %s499
        %vm501 = vcmp.eq.s32.totalorder %v500, 1
        %vm502 = vmor %vm495, %vm501
        %vm503 = vmor %vm496, %vm501
        %vm504 = vmor %vm497, %vm501
        %vm505 = vmand %vm492, %vm502
        %vm506 = vmand %vm493, %vm503
        %vm507 = vmand %vm494, %vm504
        %v508 = vsel %vm505, %v478, 0.0
        %v509 = vsel %vm506, %v479, 0.0
        %v510 = vsel %vm507, %v480, 0.0
        %v511 = vpack.c.bf16 %v509, %v508
        %v512 = vpack.c.bf16 %v510, %v510
        %vm513 = vsmask.f32 7424
        %v515 = vshrl.u32 %v511, 16
        %v517 = vshll.u32 %v511, 16
        %v519 = vrot.slane %v517, 1
        %v520 = vor.u32 %v515, %v519
        %v522 = vshll.u32 %v512, 16
        %v524 = vrot.slane %v522, 1
        %v525 = vsel %vm513, %v520, %v524
        %526 = vrot.lane.b32.xlu0 %v525, 32
        %v527 = vpop.permute.xlu0 %526
        %vm530 = vcmask 1046528
        %v531 = vrot.slane %v511, 1
        %v532 = vrot.slane %v512, 1
        %v533 = vsel %vm530, %v531, %v532
        %534 = vrot.lane.b32.xlu0 %v533, 64
        %v535 = vpop.permute.xlu0 %534
        %v537 = vsel %vm421, %v511, %v527
        %vm538 = vcmask 523264
        %v540 = vsel %vm538, %v537, %v535
        %v541 = vld [vmem:[%s5] sm:$0xf]
        %v542 = vld [vmem:[%s5 + $0x4] sm:$0xf]
        %v543 = vld [vmem:[%s5 + $0x8] sm:$0xf]
        %v544 = vld [vmem:[%s5 + $0xc] sm:$0xf]
        %v545 = vld [vmem:[%s5 + $0x10] sm:$0xf]
        %v546 = vld [vmem:[%s5 + $0x14] sm:$0xf]
        %v547 = vld [vmem:[%s5 + $0x18] sm:$0xf]
        %v548 = vld [vmem:[%s5 + $0x1c] sm:$0xf]
        %v549 = vld [vmem:[%s5 + $0x20] sm:$0xf]
        %v550 = vld [vmem:[%s5 + $0x24] sm:$0xf]
        %v551 = vld [vmem:[%s5 + $0x28] sm:$0xf]
        %v552 = vld [vmem:[%s5 + $0x2c] sm:$0xf]
        %v553 = vld [vmem:[%s6] sm:$0x1]
        %v555 = vlaneseq
        %v556 = vshrl.u32 %v555, 7
        %v557 = vsub.s32 0, %v556
        %v558 = vrot.slane %v553, %v557
        %v572 = vunpack.c.l.b16 %v541
        %v573 = vunpack.c.l.b16 %v542
        %v574 = vunpack.c.l.b16 %v543
        %v575 = vunpack.c.l.b16 %v544
        %v576 = vunpack.c.l.b16 %v545
        %v577 = vunpack.c.l.b16 %v546
        %v578 = vunpack.c.l.b16 %v547
        %v579 = vunpack.c.l.b16 %v548
        %v580 = vunpack.c.l.b16 %v549
        %v581 = vunpack.c.l.b16 %v550
        %v582 = vunpack.c.l.b16 %v551
        %v583 = vunpack.c.l.b16 %v552
        %v584 = vpack.c.b16 %v573, %v572
        %v585 = vpack.c.b16 %v575, %v574
        %v586 = vpack.c.b16 %v577, %v576
        %v587 = vpack.c.b16 %v579, %v578
        %v588 = vpack.c.b16 %v581, %v580
        %v589 = vpack.c.b16 %v583, %v582
        %vm596 = vcmask 785408
        %v597 = vsel %vm596, %v540, 0
        %599 = vmatprep.subr.bf16.mxu0 0
        %600 = vmatpush1.bf16.msra.mxu0 0
        %601 = vmatprep.subr.bf16.mxu0 0
        %602 = vmatpush1.bf16.msra.mxu0 0
        %603 = vmatprep.subr.bf16.mxu0 0
        %604 = vmatpush1.bf16.msra.mxu0 %v589
        %605 = vmatprep.subr.bf16.mxu0 0
        %606 = vmatpush1.bf16.msra.mxu0 %v588
        %607 = vmatprep.subr.bf16.mxu0 0
        %608 = vmatpush1.bf16.msra.mxu0 %v587
        %609 = vmatprep.subr.bf16.mxu0 0
        %610 = vmatpush1.bf16.msra.mxu0 %v586
        %611 = vmatprep.subr.bf16.mxu0 0
        %612 = vmatpush1.bf16.msra.mxu0 %v585
        %613 = vmatprep.subr.bf16.mxu0 0
        %614 = vmatpush1.bf16.msra.mxu0 %v584
        %615 = vmatprep.subr.bf16.mxu0 0
        %616 = vmatpush2.bf16.msra.mxu0 0
        %617 = vmatprep.subr.bf16.mxu0 0
        %618 = vmatpush2.bf16.msra.mxu0 0
        %619 = vmatprep.subr.bf16.mxu0 0
        %620 = vmatpush2.bf16.msra.mxu0 0
        %621 = vmatprep.subr.bf16.mxu0 0
        %622 = vmatpush2.bf16.msra.mxu0 0
        %623 = vmatprep.subr.bf16.mxu0 0
        %624 = vmatpush2.bf16.msra.mxu0 0
        %625 = vmatprep.subr.bf16.mxu0 0
        %626 = vmatpush2.bf16.msra.mxu0 0
        %627 = vmatprep.subr.bf16.mxu0 0
        %628 = vmatpush2.bf16.msra.mxu0 0
        %629 = vmatprep.subr.bf16.mxu0 0
        %630 = vmatpush2.bf16.msra.mxu0 0
        %631 = vmatprep.mubr.bf16.mxu0 0
        %632 = vmatmul.mubr.bf16.gmra.mxu0 %v597
        %v633 = vpop.f32.mrf.mxu0
        %v634 = vadd.f32 %v558, %v633
        %v635 = vpop.f32.mrf.mxu0
        %v636 = vpop.f32.mrf.mxu0
        %v637 = vadd.f32 %v558, %v636
        %v638 = vpop.f32.mrf.mxu0
        %639 = vdwg.mxu0
        %v640 = vmax.f32 %v634, 0.0
        %v641 = vmax.f32 %v637, 0.0
        %vm642 = vcmp.gt.f32.partialorder %v640, 0.0
        %vm643 = vcmp.gt.f32.partialorder %v641, 0.0
        %v644 = vsel %vm642, 1, 0
        %v645 = vsel %vm643, 1, 0
        %v646 = vcvt.s32.f32 %v644
        %v647 = vcvt.s32.f32 %v645
        %v648 = vsel %vm421, %v646, 0.0
        %v649 = vsel %vm421, %v647, 0.0
        %v650 = vadd.f32 %v648, %v649
        %v651 = vrot.slane %v650, 4
        %v652 = vadd.f32 %v650, %v651
        %v653 = vrot.slane %v652, 2
        %v654 = vadd.f32 %v652, %v653
        %v655 = vrot.slane %v654, 1
        %v656 = vadd.f32 %v654, %v655
        %vm657 = vcmask 253952
        %658 = vst.msk [vmem:[%s373] sm:$0x1] %vm657, %v656
        %v659 = vadd.f32 %v640, %v398
        %v660 = vadd.f32 %v641, %v399
        %661 = vst.msk [vmem:[%s367] sm:$0xff] %vm421, %v659
        %662 = vst.msk [vmem:[%s367 + $0x8] sm:$0xff] %vm421, %v660
        %s663 = sand.u32 %s216, 1
        %s664 = scalar_lea.sflag [#allocation3], %s663
        %s665 = sand.u32 %s216, 1
        %s666 = smul.addr %s665, 16
        %s667 = scalar_lea.vmem [#allocation2], %s666
        %s668 = sand.u32 %s244, 1
        %s669 = scalar_lea.sflag [#allocation5], %s668
        %s670 = sand.u32 %s244, 1
        %s671 = scalar_lea.vmem [#allocation4], %s670
        // Predicated region
        $region49: #{tpu_custom_call.1} parent=47 // pred_check
          %p672 = pneg %p226
        $region50: #{tpu_custom_call.1} parent=47 // pred_check_branch
          %674 = sbr.rel (%p672) target = $region52
        $region51: #{tpu_custom_call.1} parent=47 // pred_region
          %s675 = smul.u32 2, %s31
          %s677 = ssub.s32 256, 256
          %678 = vsyncadd %s664, %s677
          %s679 = smul.addr %s30, 2
          %s680 = sadd.s32 %s675, %s679
          %s681 = smul.addr %s680, 128
          %s682 = scalar_lea.hbm %s7, %s681
          %s683 = sshll.u32 %s667, 4
          %s684 = int_to_ptr.vmem [resolvable:$true] %s683
          %689 = dma.vmem_to_hbm [thread:$0]  %s684, 256, %s682, %s664, 128, 128, 8
        $region52: #{tpu_custom_call.1} parent=47 // pred_fallthru
          _
        // Predicated region
        $region53: #{tpu_custom_call.1} parent=47 // pred_check
          %p690 = pneg %p254
        $region54: #{tpu_custom_call.1} parent=47 // pred_check_branch
          %692 = sbr.rel (%p690) target = $region56
        $region55: #{tpu_custom_call.1} parent=47 // pred_region
          %s694 = ssub.s32 16, 16
          %695 = vsyncadd %s669, %s694
          %s696 = sadd.s32 %s31, %s30
          %s697 = smul.addr %s696, 16
          %s698 = scalar_lea.hbm %s8, %s697
          %s700 = sshll.u32 %s671, 4
          %s701 = int_to_ptr.vmem [resolvable:$true] %s700
          %703 = dma.vmem_to_hbm [thread:$0]  %s701, 16, %s698, %s669
        $region56: #{tpu_custom_call.1} parent=47 // pred_fallthru
          _
      $region48: #{tpu_custom_call.1} parent=5 // pred_fallthru
        _
      %p704 = scmp.le.s32.totalorder 2, %s21
      // Predicated region
      $region57: #{tpu_custom_call.1} parent=5 // pred_check
        %p705 = pneg %p704
      $region58: #{tpu_custom_call.1} parent=5 // pred_check_branch
        %707 = sbr.rel (%p705) target = $region60
      $region59: #{tpu_custom_call.1} parent=5 // pred_region
        %s708 = ssub.s32 %s21, 2
        // Predicated region
        $region61: #{tpu_custom_call.1} parent=59 // pred_check
          %p709 = pneg %p232
        $region62: #{tpu_custom_call.1} parent=59 // pred_check_branch
          %711 = sbr.rel (%p709) target = $region64
        $region63: #{tpu_custom_call.1} parent=59 // pred_region
          %s712 = sand.u32 %s217, 1
          %s713 = scalar_lea.sflag [#allocation3], %s712
          %s714 = sand.u32 %s217, 1
          %s715 = smul.addr %s714, 16
          %s716 = scalar_lea.vmem [#allocation2], %s715
          %717 = dma.done %s713, 256
        $region64: #{tpu_custom_call.1} parent=59 // pred_fallthru
          _
        // Predicated region
        $region65: #{tpu_custom_call.1} parent=59 // pred_check
          %p718 = pneg %p260
        $region66: #{tpu_custom_call.1} parent=59 // pred_check_branch
          %720 = sbr.rel (%p718) target = $region68
        $region67: #{tpu_custom_call.1} parent=59 // pred_region
          %s721 = sand.u32 %s245, 1
          %s722 = scalar_lea.sflag [#allocation5], %s721
          %s723 = sand.u32 %s245, 1
          %s724 = scalar_lea.vmem [#allocation4], %s723
          %725 = dma.done %s722, 16
        $region68: #{tpu_custom_call.1} parent=59 // pred_fallthru
          _
      $region60: #{tpu_custom_call.1} parent=5 // pred_fallthru
        _
    $region6: #{tpu_custom_call.1} parent=1 // loop_footer
      %s25 = sadd.s32 1, %s21
    $region7: #{tpu_custom_call.1} parent=1 // loop_footer_branch
      %20 = sbr.rel target = $region3
    $region8: #{tpu_custom_call.1} parent=1 // loop_exit
      _
    %726 = vsyncpa [#allocation3], 1
    %s727 = scalar_lea.sflag [#allocation3], 1
    %728 = vsyncpa %s727, 1
    %729 = vsyncpa [#allocation5], 1
    %s730 = scalar_lea.sflag [#allocation5], 1
    %731 = vsyncpa %s730, 1

</llo_original>
